<compile_context>
chip_gen: v7x
topology: tpu7x:2x2x1
jax: 0.10.0
libtpu: 0.0.40
codegen_flags: <defaults>
</compile_context>

<pallas_src>
import functools

import jax
import jax.numpy as jnp
from jax.experimental import pallas as pl
from jax.experimental.pallas import tpu as pltpu

PATCH = 8          # patch-embed patch size of the stand-in backbones
TM_ROWS_MAX = 512  # rows-per-tile cap (real F=128 -> one tile per batch elem)


def _pick_row_tile(f_rows):
    """Largest multiple-of-8 divisor of f_rows that is <= TM_ROWS_MAX."""
    if f_rows <= TM_ROWS_MAX:
        return f_rows
    cand = (TM_ROWS_MAX // 8) * 8
    while cand >= 8:
        if f_rows % cand == 0:
            return cand
        cand -= 8
    return 8


# -----------------------------------------------------------------------------
# Fused Pallas kernel: streaming row-mod-8 reduction + patch-embed + pool + head
# -----------------------------------------------------------------------------
def _fused_reduce_head_kernel(x_ref, s_ref, we_ref, hw_ref, hb_ref, o_ref,
                              acc_ref, *, groups, inv_np):
    """Grid = (batch, row_tiles).

    x_ref  : (1, tm, T*8) f32  raw-input row slab (trailing dims collapsed)
    s_ref  : (T*8, 8)     f32  column-mod-8 selection matrix (0/1)
    we_ref : (64, C)      f32  folded patch-embed weights (3 channels summed)
    hw_ref : (C, 6)       f32  head weight
    hb_ref : (1, 6)       f32  head bias (patch-embed biases folded in)
    o_ref  : (1, 1, 6)    f32  logits for this batch element
    acc_ref: (8, T*8)     f32  per-(row mod 8) running column sums (scratch)
    """
    t = pl.program_id(1)

    @pl.when(t == 0)
    def _init():
        acc_ref[...] = jnp.zeros_like(acc_ref)

    # Row-group reduction: sum rows sharing the same (row mod 8).  8-row
    # chunks keep the live set tiny (~32 vregs), all lane-dense VPU adds that
    # hide completely under the input DMA.
    partial = x_ref[0, 0:8, :]
    for g in range(1, groups):
        partial = partial + x_ref[0, g * 8:(g + 1) * 8, :]
    acc_ref[...] += partial

    @pl.when(t == pl.num_programs(1) - 1)
    def _finalize():
        sums = acc_ref[...]                                          # (8, T*8)
        # Column-mod-8 reduction as a tiny MXU matmul -> per-intra-patch-pixel
        # sums over all patches of the consolidated image (channel k of the
        # raw input never changes the intra-patch position).
        pps = jnp.dot(sums, s_ref[...],
                      preferred_element_type=jnp.float32)            # (8, 8)
        # Linear patch embed commutes with the sum-pool: apply it once to the
        # summed patch pixels (exact).
        c = we_ref.shape[1]
        pooled = jnp.zeros((1, c), jnp.float32)
        for r in range(8):
            pooled = pooled + jnp.dot(pps[r:r + 1, :],
                                      we_ref[r * 8:(r + 1) * 8, :],
                                      preferred_element_type=jnp.float32)
        pooled = pooled * inv_np                       # mean over true patches
        logits = (jnp.dot(pooled, hw_ref[...],
                          preferred_element_type=jnp.float32) + hb_ref[...])
        o_ref[0] = logits.astype(o_ref.dtype)


def fused_forward(x_flat, sel, w_eff, head_w, head_b, *, n_patches, tm):
    """x_flat: (bs, F, T*8) f32 -> logits (bs, 1, 6) f32."""
    bs, f_rows, t8 = x_flat.shape
    c = w_eff.shape[1]
    nout = head_w.shape[1]
    n_tiles = f_rows // tm

    kernel = functools.partial(_fused_reduce_head_kernel,
                               groups=tm // 8, inv_np=1.0 / float(n_patches))
    return pl.pallas_call(
        kernel,
        out_shape=jax.ShapeDtypeStruct((bs, 1, nout), jnp.float32),
        grid=(bs, n_tiles),
        in_specs=[
            pl.BlockSpec((1, tm, t8), lambda b, t: (b, t, 0)),
            pl.BlockSpec((t8, 8), lambda b, t: (0, 0)),
            pl.BlockSpec((PATCH * PATCH, c), lambda b, t: (0, 0)),
            pl.BlockSpec((c, nout), lambda b, t: (0, 0)),
            pl.BlockSpec((1, nout), lambda b, t: (0, 0)),
        ],
        out_specs=pl.BlockSpec((1, 1, nout), lambda b, t: (b, 0, 0)),
        scratch_shapes=[pltpu.VMEM((PATCH, t8), jnp.float32)],
        compiler_params=pltpu.CompilerParams(
            dimension_semantics=("parallel", "arbitrary")),
    )(x_flat, sel, w_eff, head_w, head_b)


# -----------------------------------------------------------------------------
# Model parameters (original 3-channel conv layout, matching the PyTorch model)
# -----------------------------------------------------------------------------
def init_params(key, *, patch=PATCH, c_backbone=32, c_transformer=24):
    k = jax.random.split(key, 6)
    kdim = 3 * patch * patch
    num_features = c_backbone + c_transformer
    return {
        "bb_w": jax.random.normal(k[0], (kdim, c_backbone), jnp.float32) * 0.02,
        "bb_b": jax.random.normal(k[1], (1, c_backbone), jnp.float32) * 0.02,
        "tr_w": jax.random.normal(k[2], (kdim, c_transformer), jnp.float32) * 0.02,
        "tr_b": jax.random.normal(k[3], (1, c_transformer), jnp.float32) * 0.02,
        "head_w": jax.random.normal(k[4], (num_features, 6), jnp.float32) * 0.02,
        "head_b": jax.random.normal(k[5], (1, 6), jnp.float32) * 0.02,
    }


# -----------------------------------------------------------------------------
# Forward
# -----------------------------------------------------------------------------
@jax.jit
def hms_forward(params, x):
    """Forward pass (signals=None, do_mixup=False, eval-mode dropout)."""
    bs, f_rows, t_cols, n_ch = x.shape
    assert n_ch == 8   # TODO(synk): 12-/16-channel variants not exercised.
    assert f_rows % PATCH == 0 and t_cols % PATCH == 0
    pp = PATCH * PATCH

    # Collapse (T, 8) -> T*8: a bitcast reshape, no HBM staging pass.  The
    # kernel reads the raw input directly (no consolidation / patch-extraction
    # / cast / pad arrays ever touch HBM).
    x_flat = x.reshape(bs, f_rows, t_cols * n_ch)

    # Fuse backbone + transformer patch-embed weights along output channels,
    # then fold the 3x identical-channel replication of the consolidated image
    # into the input dimension (exact).
    w_fused = jnp.concatenate([params["bb_w"], params["tr_w"]], axis=1)
    w_eff = w_fused[:pp] + w_fused[pp:2 * pp] + w_fused[2 * pp:]       # (64, C)

    # Patch-embed biases are constant through the mean pool -> fold into head.
    b_fused = jnp.concatenate([params["bb_b"], params["tr_b"]], axis=1)
    head_w = params["head_w"]
    head_b_eff = params["head_b"] + b_fused @ head_w                   # (1, 6)

    # Selection matrix: collapsed column j = t*8 + k maps to intra-patch
    # column (t mod 8); the channel k never changes the patch position.
    t8 = t_cols * n_ch
    col_mod = (jnp.arange(t8) // n_ch) % PATCH
    sel = (col_mod[:, None] == jnp.arange(PATCH)[None, :]).astype(jnp.float32)

    # Patch count of the consolidated (4F, 2T) image (zero padding never used).
    n_patches = (4 * f_rows // PATCH) * (2 * t_cols // PATCH)

    tm = _pick_row_tile(f_rows)
    logits = fused_forward(x_flat, sel, w_eff, head_w, head_b_eff,
                           n_patches=n_patches, tm=tm)
    return {"logits": logits[:, 0, :]}


# -----------------------------------------------------------------------------
# Pure-JAX reference (mirrors the PyTorch forward with the linear stand-in)
# -----------------------------------------------------------------------------
def reference_forward(params, x, *, patch=PATCH):
    bs = x.shape[0]
    spect = jnp.concatenate([x[:, :, :, i] for i in range(4)], axis=1)
    eegs = jnp.concatenate([x[:, :, :, i] for i in range(4, 8)], axis=1)
    img = jnp.concatenate([spect, eegs], axis=2)            # (bs, 4F, 2T)
    h, w = img.shape[1], img.shape[2]
    nh, nw = h // patch, w // patch
    p = img.reshape(bs, nh, patch, nw, patch)
    p = jnp.transpose(p, (0, 1, 3, 2, 4)).reshape(bs, nh * nw, patch * patch)
    p3 = jnp.concatenate([p, p, p], axis=-1)                 # 3 identical channels
    w_fused = jnp.concatenate([params["bb_w"], params["tr_w"]], axis=1)
    b_fused = jnp.concatenate([params["bb_b"], params["tr_b"]], axis=1)
    feats = p3 @ w_fused + b_fused                           # (bs, nP, C)
    pooled = feats.mean(axis=1)                              # AdaptiveAvgPool2d((1,1))
    return pooled @ params["head_w"] + params["head_b"]      # Dropout(eval)=id


# -----------------------------------------------------------------------------
# Main
# -----------------------------------------------------------------------------
if __name__ == "__main__":
    key = jax.random.PRNGKey(0)
    kx, kp = jax.random.split(key)

    # Small shapes consistent with the module: (bs, F, T, 8); real is (bs,128,256,8).
    bs, F, T = 2, 16, 32
    x = jax.random.normal(kx, (bs, F, T, 8), jnp.float32)
    params = init_params(kp)

    out = hms_forward(params, x)
    logits = jax.block_until_ready(out["logits"])
    assert logits.shape == (bs, 6)
    assert bool(jnp.all(jnp.isfinite(logits)))

    ref = reference_forward(params, x)
    err = float(jnp.max(jnp.abs(logits - ref)))
    assert err < 1e-3, f"kernel vs reference mismatch: {err}"
    print("KERNEL_OK")
</pallas_src>

<mosaic_0001>
module attributes {stable_mosaic.version = 11 : i64} {
  func.func @_fused_reduce_head_kernel(%arg0: i32, %arg1: i32, %arg2: memref<1x16x256xf32, #tpu.memory_space<vmem>>, %arg3: memref<256x8xf32, #tpu.memory_space<vmem>>, %arg4: memref<64x56xf32, #tpu.memory_space<vmem>>, %arg5: memref<56x6xf32, #tpu.memory_space<vmem>>, %arg6: memref<1x6xf32, #tpu.memory_space<vmem>>, %arg7: memref<1x1x6xf32, #tpu.memory_space<vmem>>, %arg8: memref<8x256xf32, #tpu.memory_space<vmem>>) attributes {dimension_semantics = [#tpu.dimension_semantics<parallel>, #tpu.dimension_semantics<arbitrary>], iteration_bounds = array<i64: 2, 1>, scalar_prefetch = 0 : i64, scratch_operands = 1 : i64, tpu.core_type = #tpu.core_type<tc>, window_params = [{transform_indices = @transform_0, window_bounds = array<i64: 1, 16, 256>}, {pipeline_mode = #tpu.pipeline_mode<synchronous>, transform_indices = @transform_1, window_bounds = array<i64: 256, 8>}, {pipeline_mode = #tpu.pipeline_mode<synchronous>, transform_indices = @transform_2, window_bounds = array<i64: 64, 56>}, {pipeline_mode = #tpu.pipeline_mode<synchronous>, transform_indices = @transform_3, window_bounds = array<i64: 56, 6>}, {pipeline_mode = #tpu.pipeline_mode<synchronous>, transform_indices = @transform_4, window_bounds = array<i64: 1, 6>}, {transform_indices = @transform_5, window_bounds = array<i64: 1, 1, 6>}]} {
    %c0_i32 = arith.constant 0 : i32
    %0 = arith.cmpi eq, %arg1, %c0_i32 : i32
    %1 = arith.extui %0 : i1 to i32
    %c0_i32_0 = arith.constant 0 : i32
    %2 = arith.cmpi ne, %1, %c0_i32_0 : i32
    scf.if %2 {
      %cst = arith.constant 0.000000e+00 : f32
      %14 = vector.broadcast %cst : f32 to vector<8x256xf32>
      %c0_11 = arith.constant 0 : index
      %c0_12 = arith.constant 0 : index
      %15 = vector.load %arg8[%c0_11, %c0_12] : memref<8x256xf32, #tpu.memory_space<vmem>>, vector<8x256xf32>
      tpu.vector_store %arg8[%c0_11, %c0_12], %14 {strides = array<i32>} : memref<8x256xf32, #tpu.memory_space<vmem>>, vector<8x256xf32>,
    } else {
    }
    %c0 = arith.constant 0 : index
    %c0_1 = arith.constant 0 : index
    %c0_2 = arith.constant 0 : index
    %3 = vector.load %arg2[%c0, %c0_1, %c0_2] : memref<1x16x256xf32, #tpu.memory_space<vmem>>, vector<1x8x256xf32>
    %4 = vector.shape_cast %3 : vector<1x8x256xf32> to vector<8x256xf32>
    %c0_3 = arith.constant 0 : index
    %c8 = arith.constant 8 : index
    %c0_4 = arith.constant 0 : index
    %5 = vector.load %arg2[%c0_3, %c8, %c0_4] : memref<1x16x256xf32, #tpu.memory_space<vmem>>, vector<1x8x256xf32>
    %6 = vector.shape_cast %5 : vector<1x8x256xf32> to vector<8x256xf32>
    %7 = arith.addf %4, %6 : vector<8x256xf32>
    %c0_5 = arith.constant 0 : index
    %c0_6 = arith.constant 0 : index
    %8 = vector.load %arg8[%c0_5, %c0_6] : memref<8x256xf32, #tpu.memory_space<vmem>>, vector<8x256xf32>
    %9 = arith.addf %8, %7 : vector<8x256xf32>
    %c0_7 = arith.constant 0 : index
    %c0_8 = arith.constant 0 : index
    %10 = vector.load %arg8[%c0_7, %c0_8] : memref<8x256xf32, #tpu.memory_space<vmem>>, vector<8x256xf32>
    tpu.vector_store %arg8[%c0_7, %c0_8], %9 {strides = array<i32>} : memref<8x256xf32, #tpu.memory_space<vmem>>, vector<8x256xf32>,
    %c0_i32_9 = arith.constant 0 : i32
    %11 = arith.cmpi eq, %arg1, %c0_i32_9 : i32
    %12 = arith.extui %11 : i1 to i32
    %c0_i32_10 = arith.constant 0 : i32
    %13 = arith.cmpi ne, %12, %c0_i32_10 : i32
    scf.if %13 {
      %c0_11 = arith.constant 0 : index
      %c0_12 = arith.constant 0 : index
      %14 = vector.load %arg8[%c0_11, %c0_12] : memref<8x256xf32, #tpu.memory_space<vmem>>, vector<8x256xf32>
      %c0_13 = arith.constant 0 : index
      %c0_14 = arith.constant 0 : index
      %15 = vector.load %arg3[%c0_13, %c0_14] : memref<256x8xf32, #tpu.memory_space<vmem>>, vector<256x8xf32>
      %cst = arith.constant dense<0.000000e+00> : vector<8x8xf32>
      %16 = tpu.matmul %14, %15, %cst {dimension_numbers = #tpu.dot_dimension_numbers<[1], [0], [0], [1], [0, 0, 1, 1], [], []>} : vector<8x256xf32>, vector<256x8xf32>, vector<8x8xf32> -> vector<8x8xf32>
      %cst_15 = arith.constant 0.000000e+00 : f32
      %17 = vector.broadcast %cst_15 : f32 to vector<1x56xf32>
      %18 = vector.extract_strided_slice %16 {offsets = [0, 0], sizes = [1, 8], strides = [1, 1]} : vector<8x8xf32> to vector<1x8xf32>
      %c0_16 = arith.constant 0 : index
      %c0_17 = arith.constant 0 : index
      %19 = vector.load %arg4[%c0_16, %c0_17] : memref<64x56xf32, #tpu.memory_space<vmem>>, vector<8x56xf32>
      %cst_18 = arith.constant dense<0.000000e+00> : vector<1x56xf32>
      %20 = tpu.matmul %18, %19, %cst_18 {dimension_numbers = #tpu.dot_dimension_numbers<[1], [0], [0], [1], [0, 0, 1, 1], [], []>} : vector<1x8xf32>, vector<8x56xf32>, vector<1x56xf32> -> vector<1x56xf32>
      %21 = arith.addf %17, %20 : vector<1x56xf32>
      %22 = vector.extract_strided_slice %16 {offsets = [1, 0], sizes = [1, 8], strides = [1, 1]} : vector<8x8xf32> to vector<1x8xf32>
      %c8_19 = arith.constant 8 : index
      %c0_20 = arith.constant 0 : index
      %23 = vector.load %arg4[%c8_19, %c0_20] : memref<64x56xf32, #tpu.memory_space<vmem>>, vector<8x56xf32>
      %cst_21 = arith.constant dense<0.000000e+00> : vector<1x56xf32>
      %24 = tpu.matmul %22, %23, %cst_21 {dimension_numbers = #tpu.dot_dimension_numbers<[1], [0], [0], [1], [0, 0, 1, 1], [], []>} : vector<1x8xf32>, vector<8x56xf32>, vector<1x56xf32> -> vector<1x56xf32>
      %25 = arith.addf %21, %24 : vector<1x56xf32>
      %26 = vector.extract_strided_slice %16 {offsets = [2, 0], sizes = [1, 8], strides = [1, 1]} : vector<8x8xf32> to vector<1x8xf32>
      %c16 = arith.constant 16 : index
      %c0_22 = arith.constant 0 : index
      %27 = vector.load %arg4[%c16, %c0_22] : memref<64x56xf32, #tpu.memory_space<vmem>>, vector<8x56xf32>
      %cst_23 = arith.constant dense<0.000000e+00> : vector<1x56xf32>
      %28 = tpu.matmul %26, %27, %cst_23 {dimension_numbers = #tpu.dot_dimension_numbers<[1], [0], [0], [1], [0, 0, 1, 1], [], []>} : vector<1x8xf32>, vector<8x56xf32>, vector<1x56xf32> -> vector<1x56xf32>
      %29 = arith.addf %25, %28 : vector<1x56xf32>
      %30 = vector.extract_strided_slice %16 {offsets = [3, 0], sizes = [1, 8], strides = [1, 1]} : vector<8x8xf32> to vector<1x8xf32>
      %c24 = arith.constant 24 : index
      %c0_24 = arith.constant 0 : index
      %31 = vector.load %arg4[%c24, %c0_24] : memref<64x56xf32, #tpu.memory_space<vmem>>, vector<8x56xf32>
      %cst_25 = arith.constant dense<0.000000e+00> : vector<1x56xf32>
      %32 = tpu.matmul %30, %31, %cst_25 {dimension_numbers = #tpu.dot_dimension_numbers<[1], [0], [0], [1], [0, 0, 1, 1], [], []>} : vector<1x8xf32>, vector<8x56xf32>, vector<1x56xf32> -> vector<1x56xf32>
      %33 = arith.addf %29, %32 : vector<1x56xf32>
      %34 = vector.extract_strided_slice %16 {offsets = [4, 0], sizes = [1, 8], strides = [1, 1]} : vector<8x8xf32> to vector<1x8xf32>
      %c32 = arith.constant 32 : index
      %c0_26 = arith.constant 0 : index
      %35 = vector.load %arg4[%c32, %c0_26] : memref<64x56xf32, #tpu.memory_space<vmem>>, vector<8x56xf32>
      %cst_27 = arith.constant dense<0.000000e+00> : vector<1x56xf32>
      %36 = tpu.matmul %34, %35, %cst_27 {dimension_numbers = #tpu.dot_dimension_numbers<[1], [0], [0], [1], [0, 0, 1, 1], [], []>} : vector<1x8xf32>, vector<8x56xf32>, vector<1x56xf32> -> vector<1x56xf32>
      %37 = arith.addf %33, %36 : vector<1x56xf32>
      %38 = vector.extract_strided_slice %16 {offsets = [5, 0], sizes = [1, 8], strides = [1, 1]} : vector<8x8xf32> to vector<1x8xf32>
      %c40 = arith.constant 40 : index
      %c0_28 = arith.constant 0 : index
      %39 = vector.load %arg4[%c40, %c0_28] : memref<64x56xf32, #tpu.memory_space<vmem>>, vector<8x56xf32>
      %cst_29 = arith.constant dense<0.000000e+00> : vector<1x56xf32>
      %40 = tpu.matmul %38, %39, %cst_29 {dimension_numbers = #tpu.dot_dimension_numbers<[1], [0], [0], [1], [0, 0, 1, 1], [], []>} : vector<1x8xf32>, vector<8x56xf32>, vector<1x56xf32> -> vector<1x56xf32>
      %41 = arith.addf %37, %40 : vector<1x56xf32>
      %42 = vector.extract_strided_slice %16 {offsets = [6, 0], sizes = [1, 8], strides = [1, 1]} : vector<8x8xf32> to vector<1x8xf32>
      %c48 = arith.constant 48 : index
      %c0_30 = arith.constant 0 : index
      %43 = vector.load %arg4[%c48, %c0_30] : memref<64x56xf32, #tpu.memory_space<vmem>>, vector<8x56xf32>
      %cst_31 = arith.constant dense<0.000000e+00> : vector<1x56xf32>
      %44 = tpu.matmul %42, %43, %cst_31 {dimension_numbers = #tpu.dot_dimension_numbers<[1], [0], [0], [1], [0, 0, 1, 1], [], []>} : vector<1x8xf32>, vector<8x56xf32>, vector<1x56xf32> -> vector<1x56xf32>
      %45 = arith.addf %41, %44 : vector<1x56xf32>
      %46 = vector.extract_strided_slice %16 {offsets = [7, 0], sizes = [1, 8], strides = [1, 1]} : vector<8x8xf32> to vector<1x8xf32>
      %c56 = arith.constant 56 : index
      %c0_32 = arith.constant 0 : index
      %47 = vector.load %arg4[%c56, %c0_32] : memref<64x56xf32, #tpu.memory_space<vmem>>, vector<8x56xf32>
      %cst_33 = arith.constant dense<0.000000e+00> : vector<1x56xf32>
      %48 = tpu.matmul %46, %47, %cst_33 {dimension_numbers = #tpu.dot_dimension_numbers<[1], [0], [0], [1], [0, 0, 1, 1], [], []>} : vector<1x8xf32>, vector<8x56xf32>, vector<1x56xf32> -> vector<1x56xf32>
      %49 = arith.addf %45, %48 : vector<1x56xf32>
      %cst_34 = arith.constant 1.562500e-02 : f32
      %50 = vector.broadcast %cst_34 : f32 to vector<1x56xf32>
      %51 = arith.mulf %49, %50 : vector<1x56xf32>
      %c0_35 = arith.constant 0 : index
      %c0_36 = arith.constant 0 : index
      %52 = vector.load %arg5[%c0_35, %c0_36] : memref<56x6xf32, #tpu.memory_space<vmem>>, vector<56x6xf32>
      %cst_37 = arith.constant dense<0.000000e+00> : vector<1x6xf32>
      %53 = tpu.matmul %51, %52, %cst_37 {dimension_numbers = #tpu.dot_dimension_numbers<[1], [0], [0], [1], [0, 0, 1, 1], [], []>} : vector<1x56xf32>, vector<56x6xf32>, vector<1x6xf32> -> vector<1x6xf32>
      %c0_38 = arith.constant 0 : index
      %c0_39 = arith.constant 0 : index
      %54 = vector.load %arg6[%c0_38, %c0_39] : memref<1x6xf32, #tpu.memory_space<vmem>>, vector<1x6xf32>
      %55 = arith.addf %53, %54 : vector<1x6xf32>
      %c0_40 = arith.constant 0 : index
      %c0_41 = arith.constant 0 : index
      %c0_42 = arith.constant 0 : index
      %56 = vector.load %arg7[%c0_40, %c0_41, %c0_42] : memref<1x1x6xf32, #tpu.memory_space<vmem>>, vector<1x1x6xf32>
      %57 = vector.shape_cast %56 : vector<1x1x6xf32> to vector<1x6xf32>
      %58 = vector.shape_cast %55 : vector<1x6xf32> to vector<1x1x6xf32>
      tpu.vector_store %arg7[%c0_40, %c0_41, %c0_42], %58 {strides = array<i32>} : memref<1x1x6xf32, #tpu.memory_space<vmem>>, vector<1x1x6xf32>,
    } else {
    }
    return
  }
  func.func @transform_0(%arg0: i32, %arg1: i32) -> (i32, i32, i32) {
    %c0_i32 = arith.constant 0 : i32
    %c0_i32_0 = arith.constant 0 : i32
    return %arg0, %arg1, %c0_i32 : i32, i32, i32
  }
  func.func @transform_1(%arg0: i32, %arg1: i32) -> (i32, i32) {
    %c0_i32 = arith.constant 0 : i32
    %c0_i32_0 = arith.constant 0 : i32
    %c0_i32_1 = arith.constant 0 : i32
    return %c0_i32, %c0_i32_0 : i32, i32
  }
  func.func @transform_2(%arg0: i32, %arg1: i32) -> (i32, i32) {
    %c0_i32 = arith.constant 0 : i32
    %c0_i32_0 = arith.constant 0 : i32
    %c0_i32_1 = arith.constant 0 : i32
    return %c0_i32, %c0_i32_0 : i32, i32
  }
  func.func @transform_3(%arg0: i32, %arg1: i32) -> (i32, i32) {
    %c0_i32 = arith.constant 0 : i32
    %c0_i32_0 = arith.constant 0 : i32
    %c0_i32_1 = arith.constant 0 : i32
    return %c0_i32, %c0_i32_0 : i32, i32
  }
  func.func @transform_4(%arg0: i32, %arg1: i32) -> (i32, i32) {
    %c0_i32 = arith.constant 0 : i32
    %c0_i32_0 = arith.constant 0 : i32
    %c0_i32_1 = arith.constant 0 : i32
    return %c0_i32, %c0_i32_0 : i32, i32
  }
  func.func @transform_5(%arg0: i32, %arg1: i32) -> (i32, i32, i32) {
    %c0_i32 = arith.constant 0 : i32
    %c0_i32_0 = arith.constant 0 : i32
    %c0_i32_1 = arith.constant 0 : i32
    return %arg0, %c0_i32, %c0_i32_0 : i32, i32, i32
  }
}

</mosaic_0001>

<llo_original>
// kernel: hms_forward.1
$region0: #{hms_forward.1}
  #allocation0 [shape = 'u32[]', space=smem, size = 0x4, offset = 0x4, fixed_abs, tag = 'smem constant byte address 0x4 - core index']
  #allocation1 [shape = 'u32[144,128]{1,0:T(1,128)}', space=vmem, size = 0x12000, scoped, tag = 'internal scratch']
  #allocation2 [shape = 'f32[8,256]{1,0:T(8,128)}', space=vmem, size = 0x2000, scoped, tag = 'scratch operand']
  %s0 = inlined_call_operand.vmem [shape: f32[2,16,256], index: 0, kind: input, shape index: {}]
  %s1 = inlined_call_operand.vmem [shape: f32[256,8], index: 1, kind: input, shape index: {}]
  %s2 = inlined_call_operand.vmem [shape: f32[64,56], index: 2, kind: input, shape index: {}]
  %s3 = inlined_call_operand.vmem [shape: f32[56,6], index: 3, kind: input, shape index: {}]
  %s4 = inlined_call_operand.vmem [shape: f32[1,6], index: 4, kind: input, shape index: {}]
  %s5 = inlined_call_operand.hbm [shape: f32[2,1,6], index: 5, kind: output, shape index: {}]
  %s6 = sld [smem:[#allocation0]]
  $region61: #{hms_forward.1} parent=0
    _
  %s8 = ssub.s32 1, %s6
  %s9 = scalar_select 0, %s8, %s6
  $region1: #{hms_forward.1} parent=0
    #allocation3 [shape = 'u8[1024]{0}', space=vmem, size = 0x400, scoped, tag = 'output window, operand 0']
    #allocation4 [shape = 's32[2]{0}', space=sflag, size = 0x8, scoped, tag = 'scoped memory for hms_forward.1']
    %10 = vsyncpa [#allocation4], 0
    %s11 = scalar_lea.sflag [#allocation4], 1
    %12 = vsyncpa %s11, 0
    loop: start=0, step=1, limit=4
    $region2: #{hms_forward.1} parent=1 // loop_pre_header
      _
    $region3: #{hms_forward.1} parent=1 // loop_header
      %s14 = sphi 0, %s18
      %p15 = scmp.ge.s32.totalorder %s14, 4
      %s21 = sphi 0, %s33
      %s22 = sphi 0, %s29
      %s23 = sphi 0, %s21
      %s24 = sphi 0, %s22
      %s25 = sphi 0, %s23
      %s26 = sphi 0, %s24
      %s38 = sphi 0, %s40
      %s41 = sphi 0, %s38
      %s42 = sphi 0, %s41
      %s58 = sphi 0, %s42
      %s62 = sphi 0, %s62
      %s64 = sphi 0, %s62
      %s65 = sphi 0, %s64
      %s79 = sphi 0, %s65
      %s83 = sphi 0, %s83
      %s85 = sphi 0, %s83
      %s86 = sphi 0, %s85
      %s100 = sphi 0, %s86
      %s104 = sphi 0, %s104
      %s106 = sphi 0, %s104
      %s107 = sphi 0, %s106
      %s121 = sphi 0, %s107
      %s125 = sphi 0, %s125
      %s127 = sphi 0, %s125
      %s128 = sphi 0, %s127
      %s142 = sphi 0, %s128
      %s148 = sphi 0, %s150
      %s151 = sphi 0, %s148
      %s152 = sphi 0, %s151
      %s168 = sphi 0, %s152
    $region4: #{hms_forward.1} parent=1 // loop_header_branch
      %17 = sbr.rel (%p15) target = $region8
    $region5: #{hms_forward.1} parent=1 // loop_body
      %s19 = ssub.s32 %s14, 1
      %s20 = ssub.s32 %s14, 2
      %s27 = sadd.s32 1, %s22
      %p28 = scmp.ge.s32.totalorder %s27, 1
      %s29 = scalar_select %p28, 0, %s27
      %s30 = sadd.s32 1, %s21
      %s31 = scalar_select %p28, %s30, %s21
      %p32 = scmp.ge.s32.totalorder %s31, 2
      %s33 = scalar_select %p32, 0, %s31
      %s34 = ssub.s32 %s21, %s33
      %s35 = ssub.s32 %s22, %s29
      %s36 = sor.u32 %s34, %s35
      %p37 = scmp.eq.s32.totalorder %s36, 0
      %s39 = sadd.s32 %s38, 1
      %s40 = scalar_select %p37, %s38, %s39
      %p43 = pneg %p37
      %p44 = scmp.eq.s32.totalorder %s14, 1
      %p45 = por %p43, %p44
      %p46 = scmp.ne.s32.totalorder %s38, %s41
      %p47 = scmp.eq.s32.totalorder %s14, 0
      %p48 = por %p46, %p47
      %p49 = scmp.ne.s32.totalorder %s38, %s41
      %p50 = scmp.eq.s32.totalorder %s19, 1
      %p51 = por %p49, %p50
      %p52 = scmp.ne.s32.totalorder %s41, %s42
      %p53 = scmp.eq.s32.totalorder %s19, 0
      %p54 = por %p52, %p53
      %p55 = scmp.ne.s32.totalorder %s41, %s42
      %p56 = scmp.eq.s32.totalorder %s20, 1
      %p57 = por %p55, %p56
      %p59 = scmp.ne.s32.totalorder %s42, %s58
      %p60 = scmp.eq.s32.totalorder %s20, 0
      %p61 = por %p59, %p60
      %s63 = sadd.s32 %s62, 1
      %p66 = scmp.eq.s32.totalorder %s14, 1
      %p67 = scmp.ne.s32.totalorder %s62, %s64
      %p68 = scmp.eq.s32.totalorder %s14, 0
      %p69 = por %p67, %p68
      %p70 = scmp.ne.s32.totalorder %s62, %s64
      %p71 = scmp.eq.s32.totalorder %s19, 1
      %p72 = por %p70, %p71
      %p73 = scmp.ne.s32.totalorder %s64, %s65
      %p74 = scmp.eq.s32.totalorder %s19, 0
      %p75 = por %p73, %p74
      %p76 = scmp.ne.s32.totalorder %s64, %s65
      %p77 = scmp.eq.s32.totalorder %s20, 1
      %p78 = por %p76, %p77
      %p80 = scmp.ne.s32.totalorder %s65, %s79
      %p81 = scmp.eq.s32.totalorder %s20, 0
      %p82 = por %p80, %p81
      %s84 = sadd.s32 %s83, 1
      %p87 = scmp.eq.s32.totalorder %s14, 1
      %p88 = scmp.ne.s32.totalorder %s83, %s85
      %p89 = scmp.eq.s32.totalorder %s14, 0
      %p90 = por %p88, %p89
      %p91 = scmp.ne.s32.totalorder %s83, %s85
      %p92 = scmp.eq.s32.totalorder %s19, 1
      %p93 = por %p91, %p92
      %p94 = scmp.ne.s32.totalorder %s85, %s86
      %p95 = scmp.eq.s32.totalorder %s19, 0
      %p96 = por %p94, %p95
      %p97 = scmp.ne.s32.totalorder %s85, %s86
      %p98 = scmp.eq.s32.totalorder %s20, 1
      %p99 = por %p97, %p98
      %p101 = scmp.ne.s32.totalorder %s86, %s100
      %p102 = scmp.eq.s32.totalorder %s20, 0
      %p103 = por %p101, %p102
      %s105 = sadd.s32 %s104, 1
      %p108 = scmp.eq.s32.totalorder %s14, 1
      %p109 = scmp.ne.s32.totalorder %s104, %s106
      %p110 = scmp.eq.s32.totalorder %s14, 0
      %p111 = por %p109, %p110
      %p112 = scmp.ne.s32.totalorder %s104, %s106
      %p113 = scmp.eq.s32.totalorder %s19, 1
      %p114 = por %p112, %p113
      %p115 = scmp.ne.s32.totalorder %s106, %s107
      %p116 = scmp.eq.s32.totalorder %s19, 0
      %p117 = por %p115, %p116
      %p118 = scmp.ne.s32.totalorder %s106, %s107
      %p119 = scmp.eq.s32.totalorder %s20, 1
      %p120 = por %p118, %p119
      %p122 = scmp.ne.s32.totalorder %s107, %s121
      %p123 = scmp.eq.s32.totalorder %s20, 0
      %p124 = por %p122, %p123
      %s126 = sadd.s32 %s125, 1
      %p129 = scmp.eq.s32.totalorder %s14, 1
      %p130 = scmp.ne.s32.totalorder %s125, %s127
      %p131 = scmp.eq.s32.totalorder %s14, 0
      %p132 = por %p130, %p131
      %p133 = scmp.ne.s32.totalorder %s125, %s127
      %p134 = scmp.eq.s32.totalorder %s19, 1
      %p135 = por %p133, %p134
      %p136 = scmp.ne.s32.totalorder %s127, %s128
      %p137 = scmp.eq.s32.totalorder %s19, 0
      %p138 = por %p136, %p137
      %p139 = scmp.ne.s32.totalorder %s127, %s128
      %p140 = scmp.eq.s32.totalorder %s20, 1
      %p141 = por %p139, %p140
      %p143 = scmp.ne.s32.totalorder %s128, %s142
      %p144 = scmp.eq.s32.totalorder %s20, 0
      %p145 = por %p143, %p144
      %s146 = ssub.s32 %s21, %s33
      %p147 = scmp.eq.s32.totalorder %s146, 0
      %s149 = sadd.s32 %s148, 1
      %s150 = scalar_select %p147, %s148, %s149
      %p153 = pneg %p147
      %p154 = scmp.eq.s32.totalorder %s14, 1
      %p155 = por %p153, %p154
      %p156 = scmp.ne.s32.totalorder %s148, %s151
      %p157 = scmp.eq.s32.totalorder %s14, 0
      %p158 = por %p156, %p157
      %p159 = scmp.ne.s32.totalorder %s148, %s151
      %p160 = scmp.eq.s32.totalorder %s19, 1
      %p161 = por %p159, %p160
      %p162 = scmp.ne.s32.totalorder %s151, %s152
      %p163 = scmp.eq.s32.totalorder %s19, 0
      %p164 = por %p162, %p163
      %p165 = scmp.ne.s32.totalorder %s151, %s152
      %p166 = scmp.eq.s32.totalorder %s20, 1
      %p167 = por %p165, %p166
      %p169 = scmp.ne.s32.totalorder %s152, %s168
      %p170 = scmp.eq.s32.totalorder %s20, 0
      %p171 = por %p169, %p170
      %p172 = scmp.le.s32.totalorder 1, %s14
      %p173 = scmp.lt.s32.totalorder %s14, 3
      %p174 = pnand %p172, %p173
      %p175 = pneg %p174
      // Predicated region
      $region9: #{hms_forward.1} parent=5 // pred_check
        _
      $region10: #{hms_forward.1} parent=5 // pred_check_branch
        %177 = sbr.rel (%p174) target = $region12
      $region11: #{hms_forward.1} parent=5 // pred_region
        %s178 = ssub.s32 %s14, 1
        // Predicated region
        $region13: #{hms_forward.1} parent=11 // pred_check
          %p179 = pneg %p75
        $region14: #{hms_forward.1} parent=11 // pred_check_branch
          %181 = sbr.rel (%p179) target = $region16
        $region15: #{hms_forward.1} parent=11 // pred_region
          _
        $region16: #{hms_forward.1} parent=11 // pred_fallthru
          _
        // Predicated region
        $region17: #{hms_forward.1} parent=11 // pred_check
          %p182 = pneg %p96
        $region18: #{hms_forward.1} parent=11 // pred_check_branch
          %184 = sbr.rel (%p182) target = $region20
        $region19: #{hms_forward.1} parent=11 // pred_region
          _
        $region20: #{hms_forward.1} parent=11 // pred_fallthru
          _
        // Predicated region
        $region21: #{hms_forward.1} parent=11 // pred_check
          %p185 = pneg %p117
        $region22: #{hms_forward.1} parent=11 // pred_check_branch
          %187 = sbr.rel (%p185) target = $region24
        $region23: #{hms_forward.1} parent=11 // pred_region
          _
        $region24: #{hms_forward.1} parent=11 // pred_fallthru
          _
        // Predicated region
        $region25: #{hms_forward.1} parent=11 // pred_check
          %p188 = pneg %p138
        $region26: #{hms_forward.1} parent=11 // pred_check_branch
          %190 = sbr.rel (%p188) target = $region28
        $region27: #{hms_forward.1} parent=11 // pred_region
          _
        $region28: #{hms_forward.1} parent=11 // pred_fallthru
          _
      $region12: #{hms_forward.1} parent=5 // pred_fallthru
        _
      %p191 = scmp.lt.s32.totalorder %s14, 2
      // Predicated region
      $region29: #{hms_forward.1} parent=5 // pred_check
        %p192 = pneg %p191
      $region30: #{hms_forward.1} parent=5 // pred_check_branch
        %194 = sbr.rel (%p192) target = $region32
      $region31: #{hms_forward.1} parent=5 // pred_region
        // Predicated region
        $region33: #{hms_forward.1} parent=31 // pred_check
          %p195 = pneg %p48
        $region34: #{hms_forward.1} parent=31 // pred_check_branch
          %197 = sbr.rel (%p195) target = $region36
        $region35: #{hms_forward.1} parent=31 // pred_region
          %s198 = smul.u32 2, %s22
          %p199 = scmp.lt.s32.totalorder %s21, 1
          %s200 = scalar_select %p199, %s21, 1
          %p201 = scmp.lt.s32.totalorder %s198, 1
          %s202 = scalar_select %p201, %s198, 1
          %s203 = smul.addr %s202, 2
          %s204 = smul.addr %s200, 4
          %s205 = sadd.s32 %s203, %s204
          %s206 = smul.addr %s205, 8
          %s207 = scalar_lea.vmem %s0, %s206
          %s208 = smul.u32 2, %s22
        $region36: #{hms_forward.1} parent=31 // pred_fallthru
          _
      $region32: #{hms_forward.1} parent=5 // pred_fallthru
        _
      %p209 = scmp.le.s32.totalorder 1, %s14
      %p210 = scmp.lt.s32.totalorder %s14, 3
      %p211 = pnand %p209, %p210
      %p212 = pneg %p211
      // Predicated region
      $region37: #{hms_forward.1} parent=5 // pred_check
        _
      $region38: #{hms_forward.1} parent=5 // pred_check_branch
        %214 = sbr.rel (%p211) target = $region40
      $region39: #{hms_forward.1} parent=5 // pred_region
        %s215 = ssub.s32 %s14, 1
        %s216 = smul.u32 2, %s24
        %p217 = scmp.lt.s32.totalorder %s23, 1
        %s218 = scalar_select %p217, %s23, 1
        %p219 = scmp.lt.s32.totalorder %s216, 1
        %s220 = scalar_select %p219, %s216, 1
        %s221 = smul.addr %s220, 2
        %s222 = smul.addr %s218, 4
        %s223 = sadd.s32 %s221, %s222
        %s224 = smul.addr %s223, 8
        %s225 = scalar_lea.vmem %s0, %s224
        %p226 = pneg %p54
        %p227 = pneg %p51
        %p228 = pneg %p75
        %p229 = pneg %p72
        %p230 = pneg %p96
        %p231 = pneg %p93
        %p232 = pneg %p117
        %p233 = pneg %p114
        %p234 = pneg %p138
        %p235 = pneg %p135
        %p236 = pneg %p164
        %p237 = pneg %p161
        %s238 = sand.u32 %s151, 1
        %s239 = scalar_lea.sflag [#allocation4], %s238
        %s240 = sand.u32 %s151, 1
        %s241 = scalar_lea.vmem [#allocation3], %s240
        %s242 = smul.u32 2, %s24
        %p243 = scmp.lt.s32.totalorder %s23, 1
        %s244 = scalar_select %p243, %s23, 1
        %p245 = scmp.lt.s32.totalorder %s242, 1
        %s246 = scalar_select %p245, %s242, 1
        %s247 = smul.addr %s246, 2
        %s248 = smul.addr %s244, 4
        %s249 = sadd.s32 %s247, %s248
        %s250 = smul.addr %s249, 8
        %s251 = scalar_lea.vmem %s0, %s250
        %s252 = smul.u32 2, %s24
        %p253 = scmp.eq.s32.totalorder %s24, 0
        // Predicated region
        $region41: #{hms_forward.1} parent=39 // pred_check
          %p254 = pneg %p253
        $region42: #{hms_forward.1} parent=39 // pred_check_branch
          %256 = sbr.rel (%p254) target = $region44
        $region43: #{hms_forward.1} parent=39 // pred_region
          %257 = vst [vmem:[#allocation2] sm:$0xff] 0.0
          %258 = vst [vmem:[#allocation2 + $0x8] sm:$0xff] 0.0
        $region44: #{hms_forward.1} parent=39 // pred_fallthru
          _
        %v259 = vld [vmem:[%s251] sm:$0xff]
        %v260 = vld [vmem:[%s251 + $0x8] sm:$0xff]
        %v261 = vld [vmem:[%s251 + $0x10] sm:$0xff]
        %v262 = vld [vmem:[%s251 + $0x18] sm:$0xff]
        %v263 = vadd.f32 %v259, %v261
        %v264 = vadd.f32 %v260, %v262
        %v265 = vld [vmem:[#allocation2] sm:$0xff]
        %v266 = vld [vmem:[#allocation2 + $0x8] sm:$0xff]
        %v267 = vadd.f32 %v265, %v263
        %v268 = vadd.f32 %v266, %v264
        %269 = vst [vmem:[#allocation2] sm:$0xff] %v267
        %270 = vst [vmem:[#allocation2 + $0x8] sm:$0xff] %v268
        // Predicated region
        $region45: #{hms_forward.1} parent=39 // pred_check
          %p271 = pneg %p253
        $region46: #{hms_forward.1} parent=39 // pred_check_branch
          %273 = sbr.rel (%p271) target = $region48
        $region47: #{hms_forward.1} parent=39 // pred_region
          %v274 = vld [vmem:[#allocation2] sm:$0xff]
          %v275 = vld [vmem:[#allocation2 + $0x8] sm:$0xff]
          %v276 = vld [vmem:[%s1] sm:$0xff]
          %v277 = vld [vmem:[%s1 + $0x8] sm:$0xff]
          %v278 = vld [vmem:[%s1 + $0x10] sm:$0xff]
          %v279 = vld [vmem:[%s1 + $0x18] sm:$0xff]
          %v280 = vld [vmem:[%s1 + $0x20] sm:$0xff]
          %v281 = vld [vmem:[%s1 + $0x28] sm:$0xff]
          %v282 = vld [vmem:[%s1 + $0x30] sm:$0xff]
          %v283 = vld [vmem:[%s1 + $0x38] sm:$0xff]
          %v284 = vld [vmem:[%s1 + $0x40] sm:$0xff]
          %v285 = vld [vmem:[%s1 + $0x48] sm:$0xff]
          %v286 = vld [vmem:[%s1 + $0x50] sm:$0xff]
          %v287 = vld [vmem:[%s1 + $0x58] sm:$0xff]
          %v288 = vld [vmem:[%s1 + $0x60] sm:$0xff]
          %v289 = vld [vmem:[%s1 + $0x68] sm:$0xff]
          %v290 = vld [vmem:[%s1 + $0x70] sm:$0xff]
          %v291 = vld [vmem:[%s1 + $0x78] sm:$0xff]
          %v292 = vld [vmem:[%s1 + $0x80] sm:$0xff]
          %v293 = vld [vmem:[%s1 + $0x88] sm:$0xff]
          %v294 = vld [vmem:[%s1 + $0x90] sm:$0xff]
          %v295 = vld [vmem:[%s1 + $0x98] sm:$0xff]
          %v296 = vld [vmem:[%s1 + $0xa0] sm:$0xff]
          %v297 = vld [vmem:[%s1 + $0xa8] sm:$0xff]
          %v298 = vld [vmem:[%s1 + $0xb0] sm:$0xff]
          %v299 = vld [vmem:[%s1 + $0xb8] sm:$0xff]
          %v300 = vld [vmem:[%s1 + $0xc0] sm:$0xff]
          %v301 = vld [vmem:[%s1 + $0xc8] sm:$0xff]
          %v302 = vld [vmem:[%s1 + $0xd0] sm:$0xff]
          %v303 = vld [vmem:[%s1 + $0xd8] sm:$0xff]
          %v304 = vld [vmem:[%s1 + $0xe0] sm:$0xff]
          %v305 = vld [vmem:[%s1 + $0xe8] sm:$0xff]
          %v306 = vld [vmem:[%s1 + $0xf0] sm:$0xff]
          %v307 = vld [vmem:[%s1 + $0xf8] sm:$0xff]
          %308 = vmatprep.subr.mxu0 0.0
          %309 = vmatpush1.msra.mxu0 %v276
          %310 = vmatprep.subr.mxu0 0.0
          %311 = vmatpush1.msra.mxu0 %v277
          %312 = vmatprep.subr.mxu0 0.0
          %313 = vmatpush1.msra.mxu0 %v278
          %314 = vmatprep.subr.mxu0 0.0
          %315 = vmatpush1.msra.mxu0 %v279
          %316 = vmatprep.subr.mxu0 0.0
          %317 = vmatpush1.msra.mxu0 %v280
          %318 = vmatprep.subr.mxu0 0.0
          %319 = vmatpush1.msra.mxu0 %v281
          %320 = vmatprep.subr.mxu0 0.0
          %321 = vmatpush1.msra.mxu0 %v282
          %322 = vmatprep.subr.mxu0 0.0
          %323 = vmatpush1.msra.mxu0 %v283
          %324 = vmatprep.subr.mxu0 0.0
          %325 = vmatpush1.msra.mxu0 %v284
          %326 = vmatprep.subr.mxu0 0.0
          %327 = vmatpush1.msra.mxu0 %v285
          %328 = vmatprep.subr.mxu0 0.0
          %329 = vmatpush1.msra.mxu0 %v286
          %330 = vmatprep.subr.mxu0 0.0
          %331 = vmatpush1.msra.mxu0 %v287
          %332 = vmatprep.subr.mxu0 0.0
          %333 = vmatpush1.msra.mxu0 %v288
          %334 = vmatprep.subr.mxu0 0.0
          %335 = vmatpush1.msra.mxu0 %v289
          %336 = vmatprep.subr.mxu0 0.0
          %337 = vmatpush1.msra.mxu0 %v290
          %338 = vmatprep.subr.mxu0 0.0
          %339 = vmatpush1.msra.mxu0 %v291
          %340 = vmatprep.subr.mxu0 0.0
          %341 = vmatpush1.msra.mxu0 %v292
          %342 = vmatprep.subr.mxu0 0.0
          %343 = vmatpush1.msra.mxu0 %v293
          %344 = vmatprep.subr.mxu0 0.0
          %345 = vmatpush1.msra.mxu0 %v294
          %346 = vmatprep.subr.mxu0 0.0
          %347 = vmatpush1.msra.mxu0 %v295
          %348 = vmatprep.subr.mxu0 0.0
          %349 = vmatpush1.msra.mxu0 %v296
          %350 = vmatprep.subr.mxu0 0.0
          %351 = vmatpush1.msra.mxu0 %v297
          %352 = vmatprep.subr.mxu0 0.0
          %353 = vmatpush1.msra.mxu0 %v298
          %354 = vmatprep.subr.mxu0 0.0
          %355 = vmatpush1.msra.mxu0 %v299
          %356 = vmatprep.subr.mxu0 0.0
          %357 = vmatpush1.msra.mxu0 %v300
          %358 = vmatprep.subr.mxu0 0.0
          %359 = vmatpush1.msra.mxu0 %v301
          %360 = vmatprep.subr.mxu0 0.0
          %361 = vmatpush1.msra.mxu0 %v302
          %362 = vmatprep.subr.mxu0 0.0
          %363 = vmatpush1.msra.mxu0 %v303
          %364 = vmatprep.subr.mxu0 0.0
          %365 = vmatpush1.msra.mxu0 %v304
          %366 = vmatprep.subr.mxu0 0.0
          %367 = vmatpush1.msra.mxu0 %v305
          %368 = vmatprep.subr.mxu0 0.0
          %369 = vmatpush1.msra.mxu0 %v306
          %370 = vmatprep.subr.mxu0 0.0
          %371 = vmatpush1.msra.mxu0 %v307
          %372 = vmatprep.mubr.f32.mxu0 %v275
          %373 = vmatmul.mubr.f32.gmra.mrb[0].mxu0 %v274
          %v374 = vpop.f32.mrb[0].mxu0
          %v375 = vadd.f32 0.0, %v374
          %v376 = vpop.f32.mrb[0].mxu0
          %377 = vdwg.mxu0
          %v378 = vld [vmem:[%s2] sm:$0xff]
          %v379 = vld [vmem:[%s2 + $0x8] sm:$0xff]
          %v381 = vrot.slane %v375, 1
          %vm382 = vcmask 64512
          %v383 = vsel %vm382, %v381, 0
          %385 = vmatprep.subr.mxu0 0.0
          %386 = vmatpush1.msra.mxu0 %v379
          %387 = vmatprep.subr.mxu0 0.0
          %388 = vmatpush1.msra.mxu0 0.0
          %389 = vmatprep.subr.mxu0 0.0
          %390 = vmatpush1.msra.mxu0 0.0
          %391 = vmatprep.subr.mxu0 0.0
          %392 = vmatpush1.msra.mxu0 0.0
          %393 = vmatprep.subr.mxu0 0.0
          %394 = vmatpush1.msra.mxu0 0.0
          %395 = vmatprep.subr.mxu0 0.0
          %396 = vmatpush1.msra.mxu0 0.0
          %397 = vmatprep.subr.mxu0 0.0
          %398 = vmatpush1.msra.mxu0 0.0
          %399 = vmatprep.subr.mxu0 0.0
          %400 = vmatpush1.msra.mxu0 0.0
          %401 = vmatprep.subr.mxu0 0.0
          %402 = vmatpush1.msra.mxu0 0.0
          %403 = vmatprep.subr.mxu0 0.0
          %404 = vmatpush1.msra.mxu0 0.0
          %405 = vmatprep.subr.mxu0 0.0
          %406 = vmatpush1.msra.mxu0 0.0
          %407 = vmatprep.subr.mxu0 0.0
          %408 = vmatpush1.msra.mxu0 0.0
          %409 = vmatprep.subr.mxu0 0.0
          %410 = vmatpush1.msra.mxu0 0.0
          %411 = vmatprep.subr.mxu0 0.0
          %412 = vmatpush1.msra.mxu0 0.0
          %413 = vmatprep.subr.mxu0 0.0
          %414 = vmatpush1.msra.mxu0 0.0
          %415 = vmatprep.subr.mxu0 0.0
          %416 = vmatpush1.msra.mxu0 0.0
          %417 = vmatprep.subr.mxu0 0.0
          %418 = vmatpush1.msra.mxu0 0.0
          %419 = vmatprep.subr.mxu0 0.0
          %420 = vmatpush1.msra.mxu0 0.0
          %421 = vmatprep.subr.mxu0 0.0
          %422 = vmatpush1.msra.mxu0 0.0
          %423 = vmatprep.subr.mxu0 0.0
          %424 = vmatpush1.msra.mxu0 0.0
          %425 = vmatprep.subr.mxu0 0.0
          %426 = vmatpush1.msra.mxu0 0.0
          %427 = vmatprep.subr.mxu0 0.0
          %428 = vmatpush1.msra.mxu0 0.0
          %429 = vmatprep.subr.mxu0 0.0
          %430 = vmatpush1.msra.mxu0 0.0
          %431 = vmatprep.subr.mxu0 0.0
          %432 = vmatpush1.msra.mxu0 0.0
          %433 = vmatprep.subr.mxu0 0.0
          %434 = vmatpush1.msra.mxu0 0.0
          %435 = vmatprep.subr.mxu0 0.0
          %436 = vmatpush1.msra.mxu0 0.0
          %437 = vmatprep.subr.mxu0 0.0
          %438 = vmatpush1.msra.mxu0 0.0
          %439 = vmatprep.subr.mxu0 0.0
          %440 = vmatpush1.msra.mxu0 0.0
          %441 = vmatprep.subr.mxu0 0.0
          %442 = vmatpush1.msra.mxu0 0.0
          %443 = vmatprep.subr.mxu0 0.0
          %444 = vmatpush1.msra.mxu0 0.0
          %445 = vmatprep.subr.mxu0 0.0
          %446 = vmatpush1.msra.mxu0 0.0
          %447 = vmatprep.subr.mxu0 0.0
          %448 = vmatpush1.msra.mxu0 0.0
          %449 = vmatprep.mubr.f32.mxu0 0.0
          %450 = vmatmul.mubr.f32.gmra.mrb[0].mxu0 %v383
          %v451 = vpop.f32.mrb[0].mxu0
          %v452 = vadd.f32 0.0, %v451
          %v453 = vpop.f32.mrb[0].mxu0
          %454 = vdwg.mxu0
          %v455 = vsel %vm382, %v375, 0
          %457 = vmatprep.subr.mxu0 0.0
          %458 = vmatpush1.msra.mxu0 %v378
          %459 = vmatprep.subr.mxu0 0.0
          %460 = vmatpush1.msra.mxu0 0.0
          %461 = vmatprep.subr.mxu0 0.0
          %462 = vmatpush1.msra.mxu0 0.0
          %463 = vmatprep.subr.mxu0 0.0
          %464 = vmatpush1.msra.mxu0 0.0
          %465 = vmatprep.subr.mxu0 0.0
          %466 = vmatpush1.msra.mxu0 0.0
          %467 = vmatprep.subr.mxu0 0.0
          %468 = vmatpush1.msra.mxu0 0.0
          %469 = vmatprep.subr.mxu0 0.0
          %470 = vmatpush1.msra.mxu0 0.0
          %471 = vmatprep.subr.mxu0 0.0
          %472 = vmatpush1.msra.mxu0 0.0
          %473 = vmatprep.subr.mxu0 0.0
          %474 = vmatpush1.msra.mxu0 0.0
          %475 = vmatprep.subr.mxu0 0.0
          %476 = vmatpush1.msra.mxu0 0.0
          %477 = vmatprep.subr.mxu0 0.0
          %478 = vmatpush1.msra.mxu0 0.0
          %479 = vmatprep.subr.mxu0 0.0
          %480 = vmatpush1.msra.mxu0 0.0
          %481 = vmatprep.subr.mxu0 0.0
          %482 = vmatpush1.msra.mxu0 0.0
          %483 = vmatprep.subr.mxu0 0.0
          %484 = vmatpush1.msra.mxu0 0.0
          %485 = vmatprep.subr.mxu0 0.0
          %486 = vmatpush1.msra.mxu0 0.0
          %487 = vmatprep.subr.mxu0 0.0
          %488 = vmatpush1.msra.mxu0 0.0
          %489 = vmatprep.subr.mxu0 0.0
          %490 = vmatpush1.msra.mxu0 0.0
          %491 = vmatprep.subr.mxu0 0.0
          %492 = vmatpush1.msra.mxu0 0.0
          %493 = vmatprep.subr.mxu0 0.0
          %494 = vmatpush1.msra.mxu0 0.0
          %495 = vmatprep.subr.mxu0 0.0
          %496 = vmatpush1.msra.mxu0 0.0
          %497 = vmatprep.subr.mxu0 0.0
          %498 = vmatpush1.msra.mxu0 0.0
          %499 = vmatprep.subr.mxu0 0.0
          %500 = vmatpush1.msra.mxu0 0.0
          %501 = vmatprep.subr.mxu0 0.0
          %502 = vmatpush1.msra.mxu0 0.0
          %503 = vmatprep.subr.mxu0 0.0
          %504 = vmatpush1.msra.mxu0 0.0
          %505 = vmatprep.subr.mxu0 0.0
          %506 = vmatpush1.msra.mxu0 0.0
          %507 = vmatprep.subr.mxu0 0.0
          %508 = vmatpush1.msra.mxu0 0.0
          %509 = vmatprep.subr.mxu0 0.0
          %510 = vmatpush1.msra.mxu0 0.0
          %511 = vmatprep.subr.mxu0 0.0
          %512 = vmatpush1.msra.mxu0 0.0
          %513 = vmatprep.subr.mxu0 0.0
          %514 = vmatpush1.msra.mxu0 0.0
          %515 = vmatprep.subr.mxu0 0.0
          %516 = vmatpush1.msra.mxu0 0.0
          %517 = vmatprep.subr.mxu0 0.0
          %518 = vmatpush1.msra.mxu0 0.0
          %519 = vmatprep.subr.mxu0 0.0
          %520 = vmatpush1.msra.mxu0 0.0
          %521 = vmatprep.mubr.f32.mxu0 0.0
          %522 = vmatmul.mubr.f32.gmra.mrb[0].mxu0 %v455
          %v523 = vpop.f32.mrb[0].mxu0
          %v524 = vadd.f32 %v452, %v523
          %v525 = vpop.f32.mrb[0].mxu0
          %526 = vdwg.mxu0
          %v527 = vld [vmem:[%s2 + $0x10] sm:$0xff]
          %v528 = vrot.slane %v375, 2
          %v529 = vsel %vm382, %v528, 0
          %531 = vmatprep.subr.mxu0 0.0
          %532 = vmatpush1.msra.mxu0 %v527
          %533 = vmatprep.subr.mxu0 0.0
          %534 = vmatpush1.msra.mxu0 0.0
          %535 = vmatprep.subr.mxu0 0.0
          %536 = vmatpush1.msra.mxu0 0.0
          %537 = vmatprep.subr.mxu0 0.0
          %538 = vmatpush1.msra.mxu0 0.0
          %539 = vmatprep.subr.mxu0 0.0
          %540 = vmatpush1.msra.mxu0 0.0
          %541 = vmatprep.subr.mxu0 0.0
          %542 = vmatpush1.msra.mxu0 0.0
          %543 = vmatprep.subr.mxu0 0.0
          %544 = vmatpush1.msra.mxu0 0.0
          %545 = vmatprep.subr.mxu0 0.0
          %546 = vmatpush1.msra.mxu0 0.0
          %547 = vmatprep.subr.mxu0 0.0
          %548 = vmatpush1.msra.mxu0 0.0
          %549 = vmatprep.subr.mxu0 0.0
          %550 = vmatpush1.msra.mxu0 0.0
          %551 = vmatprep.subr.mxu0 0.0
          %552 = vmatpush1.msra.mxu0 0.0
          %553 = vmatprep.subr.mxu0 0.0
          %554 = vmatpush1.msra.mxu0 0.0
          %555 = vmatprep.subr.mxu0 0.0
          %556 = vmatpush1.msra.mxu0 0.0
          %557 = vmatprep.subr.mxu0 0.0
          %558 = vmatpush1.msra.mxu0 0.0
          %559 = vmatprep.subr.mxu0 0.0
          %560 = vmatpush1.msra.mxu0 0.0
          %561 = vmatprep.subr.mxu0 0.0
          %562 = vmatpush1.msra.mxu0 0.0
          %563 = vmatprep.subr.mxu0 0.0
          %564 = vmatpush1.msra.mxu0 0.0
          %565 = vmatprep.subr.mxu0 0.0
          %566 = vmatpush1.msra.mxu0 0.0
          %567 = vmatprep.subr.mxu0 0.0
          %568 = vmatpush1.msra.mxu0 0.0
          %569 = vmatprep.subr.mxu0 0.0
          %570 = vmatpush1.msra.mxu0 0.0
          %571 = vmatprep.subr.mxu0 0.0
          %572 = vmatpush1.msra.mxu0 0.0
          %573 = vmatprep.subr.mxu0 0.0
          %574 = vmatpush1.msra.mxu0 0.0
          %575 = vmatprep.subr.mxu0 0.0
          %576 = vmatpush1.msra.mxu0 0.0
          %577 = vmatprep.subr.mxu0 0.0
          %578 = vmatpush1.msra.mxu0 0.0
          %579 = vmatprep.subr.mxu0 0.0
          %580 = vmatpush1.msra.mxu0 0.0
          %581 = vmatprep.subr.mxu0 0.0
          %582 = vmatpush1.msra.mxu0 0.0
          %583 = vmatprep.subr.mxu0 0.0
          %584 = vmatpush1.msra.mxu0 0.0
          %585 = vmatprep.subr.mxu0 0.0
          %586 = vmatpush1.msra.mxu0 0.0
          %587 = vmatprep.subr.mxu0 0.0
          %588 = vmatpush1.msra.mxu0 0.0
          %589 = vmatprep.subr.mxu0 0.0
          %590 = vmatpush1.msra.mxu0 0.0
          %591 = vmatprep.subr.mxu0 0.0
          %592 = vmatpush1.msra.mxu0 0.0
          %593 = vmatprep.subr.mxu0 0.0
          %594 = vmatpush1.msra.mxu0 0.0
          %595 = vmatprep.mubr.f32.mxu0 0.0
          %596 = vmatmul.mubr.f32.gmra.mrb[0].mxu0 %v529
          %v597 = vpop.f32.mrb[0].mxu0
          %v598 = vadd.f32 0.0, %v597
          %v599 = vpop.f32.mrb[0].mxu0
          %600 = vdwg.mxu0
          %v601 = vadd.f32 %v524, %v598
          %v602 = vld [vmem:[%s2 + $0x18] sm:$0xff]
          %v603 = vrot.slane %v375, 3
          %v604 = vsel %vm382, %v603, 0
          %606 = vmatprep.subr.mxu0 0.0
          %607 = vmatpush1.msra.mxu0 %v602
          %608 = vmatprep.subr.mxu0 0.0
          %609 = vmatpush1.msra.mxu0 0.0
          %610 = vmatprep.subr.mxu0 0.0
          %611 = vmatpush1.msra.mxu0 0.0
          %612 = vmatprep.subr.mxu0 0.0
          %613 = vmatpush1.msra.mxu0 0.0
          %614 = vmatprep.subr.mxu0 0.0
          %615 = vmatpush1.msra.mxu0 0.0
          %616 = vmatprep.subr.mxu0 0.0
          %617 = vmatpush1.msra.mxu0 0.0
          %618 = vmatprep.subr.mxu0 0.0
          %619 = vmatpush1.msra.mxu0 0.0
          %620 = vmatprep.subr.mxu0 0.0
          %621 = vmatpush1.msra.mxu0 0.0
          %622 = vmatprep.subr.mxu0 0.0
          %623 = vmatpush1.msra.mxu0 0.0
          %624 = vmatprep.subr.mxu0 0.0
          %625 = vmatpush1.msra.mxu0 0.0
          %626 = vmatprep.subr.mxu0 0.0
          %627 = vmatpush1.msra.mxu0 0.0
          %628 = vmatprep.subr.mxu0 0.0
          %629 = vmatpush1.msra.mxu0 0.0
          %630 = vmatprep.subr.mxu0 0.0
          %631 = vmatpush1.msra.mxu0 0.0
          %632 = vmatprep.subr.mxu0 0.0
          %633 = vmatpush1.msra.mxu0 0.0
          %634 = vmatprep.subr.mxu0 0.0
          %635 = vmatpush1.msra.mxu0 0.0
          %636 = vmatprep.subr.mxu0 0.0
          %637 = vmatpush1.msra.mxu0 0.0
          %638 = vmatprep.subr.mxu0 0.0
          %639 = vmatpush1.msra.mxu0 0.0
          %640 = vmatprep.subr.mxu0 0.0
          %641 = vmatpush1.msra.mxu0 0.0
          %642 = vmatprep.subr.mxu0 0.0
          %643 = vmatpush1.msra.mxu0 0.0
          %644 = vmatprep.subr.mxu0 0.0
          %645 = vmatpush1.msra.mxu0 0.0
          %646 = vmatprep.subr.mxu0 0.0
          %647 = vmatpush1.msra.mxu0 0.0
          %648 = vmatprep.subr.mxu0 0.0
          %649 = vmatpush1.msra.mxu0 0.0
          %650 = vmatprep.subr.mxu0 0.0
          %651 = vmatpush1.msra.mxu0 0.0
          %652 = vmatprep.subr.mxu0 0.0
          %653 = vmatpush1.msra.mxu0 0.0
          %654 = vmatprep.subr.mxu0 0.0
          %655 = vmatpush1.msra.mxu0 0.0
          %656 = vmatprep.subr.mxu0 0.0
          %657 = vmatpush1.msra.mxu0 0.0
          %658 = vmatprep.subr.mxu0 0.0
          %659 = vmatpush1.msra.mxu0 0.0
          %660 = vmatprep.subr.mxu0 0.0
          %661 = vmatpush1.msra.mxu0 0.0
          %662 = vmatprep.subr.mxu0 0.0
          %663 = vmatpush1.msra.mxu0 0.0
          %664 = vmatprep.subr.mxu0 0.0
          %665 = vmatpush1.msra.mxu0 0.0
          %666 = vmatprep.subr.mxu0 0.0
          %667 = vmatpush1.msra.mxu0 0.0
          %668 = vmatprep.subr.mxu0 0.0
          %669 = vmatpush1.msra.mxu0 0.0
          %670 = vmatprep.mubr.f32.mxu0 0.0
          %671 = vmatmul.mubr.f32.gmra.mrb[0].mxu0 %v604
          %v672 = vpop.f32.mrb[0].mxu0
          %v673 = vadd.f32 0.0, %v672
          %v674 = vpop.f32.mrb[0].mxu0
          %675 = vdwg.mxu0
          %v676 = vadd.f32 %v601, %v673
          %v677 = vld [vmem:[%s2 + $0x20] sm:$0xff]
          %v678 = vrot.slane %v375, 4
          %v679 = vsel %vm382, %v678, 0
          %681 = vmatprep.subr.mxu0 0.0
          %682 = vmatpush1.msra.mxu0 %v677
          %683 = vmatprep.subr.mxu0 0.0
          %684 = vmatpush1.msra.mxu0 0.0
          %685 = vmatprep.subr.mxu0 0.0
          %686 = vmatpush1.msra.mxu0 0.0
          %687 = vmatprep.subr.mxu0 0.0
          %688 = vmatpush1.msra.mxu0 0.0
          %689 = vmatprep.subr.mxu0 0.0
          %690 = vmatpush1.msra.mxu0 0.0
          %691 = vmatprep.subr.mxu0 0.0
          %692 = vmatpush1.msra.mxu0 0.0
          %693 = vmatprep.subr.mxu0 0.0
          %694 = vmatpush1.msra.mxu0 0.0
          %695 = vmatprep.subr.mxu0 0.0
          %696 = vmatpush1.msra.mxu0 0.0
          %697 = vmatprep.subr.mxu0 0.0
          %698 = vmatpush1.msra.mxu0 0.0
          %699 = vmatprep.subr.mxu0 0.0
          %700 = vmatpush1.msra.mxu0 0.0
          %701 = vmatprep.subr.mxu0 0.0
          %702 = vmatpush1.msra.mxu0 0.0
          %703 = vmatprep.subr.mxu0 0.0
          %704 = vmatpush1.msra.mxu0 0.0
          %705 = vmatprep.subr.mxu0 0.0
          %706 = vmatpush1.msra.mxu0 0.0
          %707 = vmatprep.subr.mxu0 0.0
          %708 = vmatpush1.msra.mxu0 0.0
          %709 = vmatprep.subr.mxu0 0.0
          %710 = vmatpush1.msra.mxu0 0.0
          %711 = vmatprep.subr.mxu0 0.0
          %712 = vmatpush1.msra.mxu0 0.0
          %713 = vmatprep.subr.mxu0 0.0
          %714 = vmatpush1.msra.mxu0 0.0
          %715 = vmatprep.subr.mxu0 0.0
          %716 = vmatpush1.msra.mxu0 0.0
          %717 = vmatprep.subr.mxu0 0.0
          %718 = vmatpush1.msra.mxu0 0.0
          %719 = vmatprep.subr.mxu0 0.0
          %720 = vmatpush1.msra.mxu0 0.0
          %721 = vmatprep.subr.mxu0 0.0
          %722 = vmatpush1.msra.mxu0 0.0
          %723 = vmatprep.subr.mxu0 0.0
          %724 = vmatpush1.msra.mxu0 0.0
          %725 = vmatprep.subr.mxu0 0.0
          %726 = vmatpush1.msra.mxu0 0.0
          %727 = vmatprep.subr.mxu0 0.0
          %728 = vmatpush1.msra.mxu0 0.0
          %729 = vmatprep.subr.mxu0 0.0
          %730 = vmatpush1.msra.mxu0 0.0
          %731 = vmatprep.subr.mxu0 0.0
          %732 = vmatpush1.msra.mxu0 0.0
          %733 = vmatprep.subr.mxu0 0.0
          %734 = vmatpush1.msra.mxu0 0.0
          %735 = vmatprep.subr.mxu0 0.0
          %736 = vmatpush1.msra.mxu0 0.0
          %737 = vmatprep.subr.mxu0 0.0
          %738 = vmatpush1.msra.mxu0 0.0
          %739 = vmatprep.subr.mxu0 0.0
          %740 = vmatpush1.msra.mxu0 0.0
          %741 = vmatprep.subr.mxu0 0.0
          %742 = vmatpush1.msra.mxu0 0.0
          %743 = vmatprep.subr.mxu0 0.0
          %744 = vmatpush1.msra.mxu0 0.0
          %745 = vmatprep.mubr.f32.mxu0 0.0
          %746 = vmatmul.mubr.f32.gmra.mrb[0].mxu0 %v679
          %v747 = vpop.f32.mrb[0].mxu0
          %v748 = vadd.f32 0.0, %v747
          %v749 = vpop.f32.mrb[0].mxu0
          %750 = vdwg.mxu0
          %v751 = vadd.f32 %v676, %v748
          %v752 = vld [vmem:[%s2 + $0x28] sm:$0xff]
          %v753 = vrot.slane %v375, 5
          %v754 = vsel %vm382, %v753, 0
          %756 = vmatprep.subr.mxu0 0.0
          %757 = vmatpush1.msra.mxu0 %v752
          %758 = vmatprep.subr.mxu0 0.0
          %759 = vmatpush1.msra.mxu0 0.0
          %760 = vmatprep.subr.mxu0 0.0
          %761 = vmatpush1.msra.mxu0 0.0
          %762 = vmatprep.subr.mxu0 0.0
          %763 = vmatpush1.msra.mxu0 0.0
          %764 = vmatprep.subr.mxu0 0.0
          %765 = vmatpush1.msra.mxu0 0.0
          %766 = vmatprep.subr.mxu0 0.0
          %767 = vmatpush1.msra.mxu0 0.0
          %768 = vmatprep.subr.mxu0 0.0
          %769 = vmatpush1.msra.mxu0 0.0
          %770 = vmatprep.subr.mxu0 0.0
          %771 = vmatpush1.msra.mxu0 0.0
          %772 = vmatprep.subr.mxu0 0.0
          %773 = vmatpush1.msra.mxu0 0.0
          %774 = vmatprep.subr.mxu0 0.0
          %775 = vmatpush1.msra.mxu0 0.0
          %776 = vmatprep.subr.mxu0 0.0
          %777 = vmatpush1.msra.mxu0 0.0
          %778 = vmatprep.subr.mxu0 0.0
          %779 = vmatpush1.msra.mxu0 0.0
          %780 = vmatprep.subr.mxu0 0.0
          %781 = vmatpush1.msra.mxu0 0.0
          %782 = vmatprep.subr.mxu0 0.0
          %783 = vmatpush1.msra.mxu0 0.0
          %784 = vmatprep.subr.mxu0 0.0
          %785 = vmatpush1.msra.mxu0 0.0
          %786 = vmatprep.subr.mxu0 0.0
          %787 = vmatpush1.msra.mxu0 0.0
          %788 = vmatprep.subr.mxu0 0.0
          %789 = vmatpush1.msra.mxu0 0.0
          %790 = vmatprep.subr.mxu0 0.0
          %791 = vmatpush1.msra.mxu0 0.0
          %792 = vmatprep.subr.mxu0 0.0
          %793 = vmatpush1.msra.mxu0 0.0
          %794 = vmatprep.subr.mxu0 0.0
          %795 = vmatpush1.msra.mxu0 0.0
          %796 = vmatprep.subr.mxu0 0.0
          %797 = vmatpush1.msra.mxu0 0.0
          %798 = vmatprep.subr.mxu0 0.0
          %799 = vmatpush1.msra.mxu0 0.0
          %800 = vmatprep.subr.mxu0 0.0
          %801 = vmatpush1.msra.mxu0 0.0
          %802 = vmatprep.subr.mxu0 0.0
          %803 = vmatpush1.msra.mxu0 0.0
          %804 = vmatprep.subr.mxu0 0.0
          %805 = vmatpush1.msra.mxu0 0.0
          %806 = vmatprep.subr.mxu0 0.0
          %807 = vmatpush1.msra.mxu0 0.0
          %808 = vmatprep.subr.mxu0 0.0
          %809 = vmatpush1.msra.mxu0 0.0
          %810 = vmatprep.subr.mxu0 0.0
          %811 = vmatpush1.msra.mxu0 0.0
          %812 = vmatprep.subr.mxu0 0.0
          %813 = vmatpush1.msra.mxu0 0.0
          %814 = vmatprep.subr.mxu0 0.0
          %815 = vmatpush1.msra.mxu0 0.0
          %816 = vmatprep.subr.mxu0 0.0
          %817 = vmatpush1.msra.mxu0 0.0
          %818 = vmatprep.subr.mxu0 0.0
          %819 = vmatpush1.msra.mxu0 0.0
          %820 = vmatprep.mubr.f32.mxu0 0.0
          %821 = vmatmul.mubr.f32.gmra.mrb[0].mxu0 %v754
          %v822 = vpop.f32.mrb[0].mxu0
          %v823 = vadd.f32 0.0, %v822
          %v824 = vpop.f32.mrb[0].mxu0
          %825 = vdwg.mxu0
          %v826 = vadd.f32 %v751, %v823
          %v827 = vld [vmem:[%s2 + $0x30] sm:$0xff]
          %v828 = vrot.slane %v375, 6
          %v829 = vsel %vm382, %v828, 0
          %831 = vmatprep.subr.mxu0 0.0
          %832 = vmatpush1.msra.mxu0 %v827
          %833 = vmatprep.subr.mxu0 0.0
          %834 = vmatpush1.msra.mxu0 0.0
          %835 = vmatprep.subr.mxu0 0.0
          %836 = vmatpush1.msra.mxu0 0.0
          %837 = vmatprep.subr.mxu0 0.0
          %838 = vmatpush1.msra.mxu0 0.0
          %839 = vmatprep.subr.mxu0 0.0
          %840 = vmatpush1.msra.mxu0 0.0
          %841 = vmatprep.subr.mxu0 0.0
          %842 = vmatpush1.msra.mxu0 0.0
          %843 = vmatprep.subr.mxu0 0.0
          %844 = vmatpush1.msra.mxu0 0.0
          %845 = vmatprep.subr.mxu0 0.0
          %846 = vmatpush1.msra.mxu0 0.0
          %847 = vmatprep.subr.mxu0 0.0
          %848 = vmatpush1.msra.mxu0 0.0
          %849 = vmatprep.subr.mxu0 0.0
          %850 = vmatpush1.msra.mxu0 0.0
          %851 = vmatprep.subr.mxu0 0.0
          %852 = vmatpush1.msra.mxu0 0.0
          %853 = vmatprep.subr.mxu0 0.0
          %854 = vmatpush1.msra.mxu0 0.0
          %855 = vmatprep.subr.mxu0 0.0
          %856 = vmatpush1.msra.mxu0 0.0
          %857 = vmatprep.subr.mxu0 0.0
          %858 = vmatpush1.msra.mxu0 0.0
          %859 = vmatprep.subr.mxu0 0.0
          %860 = vmatpush1.msra.mxu0 0.0
          %861 = vmatprep.subr.mxu0 0.0
          %862 = vmatpush1.msra.mxu0 0.0
          %863 = vmatprep.subr.mxu0 0.0
          %864 = vmatpush1.msra.mxu0 0.0
          %865 = vmatprep.subr.mxu0 0.0
          %866 = vmatpush1.msra.mxu0 0.0
          %867 = vmatprep.subr.mxu0 0.0
          %868 = vmatpush1.msra.mxu0 0.0
          %869 = vmatprep.subr.mxu0 0.0
          %870 = vmatpush1.msra.mxu0 0.0
          %871 = vmatprep.subr.mxu0 0.0
          %872 = vmatpush1.msra.mxu0 0.0
          %873 = vmatprep.subr.mxu0 0.0
          %874 = vmatpush1.msra.mxu0 0.0
          %875 = vmatprep.subr.mxu0 0.0
          %876 = vmatpush1.msra.mxu0 0.0
          %877 = vmatprep.subr.mxu0 0.0
          %878 = vmatpush1.msra.mxu0 0.0
          %879 = vmatprep.subr.mxu0 0.0
          %880 = vmatpush1.msra.mxu0 0.0
          %881 = vmatprep.subr.mxu0 0.0
          %882 = vmatpush1.msra.mxu0 0.0
          %883 = vmatprep.subr.mxu0 0.0
          %884 = vmatpush1.msra.mxu0 0.0
          %885 = vmatprep.subr.mxu0 0.0
          %886 = vmatpush1.msra.mxu0 0.0
          %887 = vmatprep.subr.mxu0 0.0
          %888 = vmatpush1.msra.mxu0 0.0
          %889 = vmatprep.subr.mxu0 0.0
          %890 = vmatpush1.msra.mxu0 0.0
          %891 = vmatprep.subr.mxu0 0.0
          %892 = vmatpush1.msra.mxu0 0.0
          %893 = vmatprep.subr.mxu0 0.0
          %894 = vmatpush1.msra.mxu0 0.0
          %895 = vmatprep.mubr.f32.mxu0 0.0
          %896 = vmatmul.mubr.f32.gmra.mrb[0].mxu0 %v829
          %v897 = vpop.f32.mrb[0].mxu0
          %v898 = vadd.f32 0.0, %v897
          %v899 = vpop.f32.mrb[0].mxu0
          %900 = vdwg.mxu0
          %v901 = vadd.f32 %v826, %v898
          %v902 = vld [vmem:[%s2 + $0x38] sm:$0xff]
          %v903 = vrot.slane %v375, 7
          %v904 = vsel %vm382, %v903, 0
          %906 = vmatprep.subr.mxu0 0.0
          %907 = vmatpush1.msra.mxu0 %v902
          %908 = vmatprep.subr.mxu0 0.0
          %909 = vmatpush1.msra.mxu0 0.0
          %910 = vmatprep.subr.mxu0 0.0
          %911 = vmatpush1.msra.mxu0 0.0
          %912 = vmatprep.subr.mxu0 0.0
          %913 = vmatpush1.msra.mxu0 0.0
          %914 = vmatprep.subr.mxu0 0.0
          %915 = vmatpush1.msra.mxu0 0.0
          %916 = vmatprep.subr.mxu0 0.0
          %917 = vmatpush1.msra.mxu0 0.0
          %918 = vmatprep.subr.mxu0 0.0
          %919 = vmatpush1.msra.mxu0 0.0
          %920 = vmatprep.subr.mxu0 0.0
          %921 = vmatpush1.msra.mxu0 0.0
          %922 = vmatprep.subr.mxu0 0.0
          %923 = vmatpush1.msra.mxu0 0.0
          %924 = vmatprep.subr.mxu0 0.0
          %925 = vmatpush1.msra.mxu0 0.0
          %926 = vmatprep.subr.mxu0 0.0
          %927 = vmatpush1.msra.mxu0 0.0
          %928 = vmatprep.subr.mxu0 0.0
          %929 = vmatpush1.msra.mxu0 0.0
          %930 = vmatprep.subr.mxu0 0.0
          %931 = vmatpush1.msra.mxu0 0.0
          %932 = vmatprep.subr.mxu0 0.0
          %933 = vmatpush1.msra.mxu0 0.0
          %934 = vmatprep.subr.mxu0 0.0
          %935 = vmatpush1.msra.mxu0 0.0
          %936 = vmatprep.subr.mxu0 0.0
          %937 = vmatpush1.msra.mxu0 0.0
          %938 = vmatprep.subr.mxu0 0.0
          %939 = vmatpush1.msra.mxu0 0.0
          %940 = vmatprep.subr.mxu0 0.0
          %941 = vmatpush1.msra.mxu0 0.0
          %942 = vmatprep.subr.mxu0 0.0
          %943 = vmatpush1.msra.mxu0 0.0
          %944 = vmatprep.subr.mxu0 0.0
          %945 = vmatpush1.msra.mxu0 0.0
          %946 = vmatprep.subr.mxu0 0.0
          %947 = vmatpush1.msra.mxu0 0.0
          %948 = vmatprep.subr.mxu0 0.0
          %949 = vmatpush1.msra.mxu0 0.0
          %950 = vmatprep.subr.mxu0 0.0
          %951 = vmatpush1.msra.mxu0 0.0
          %952 = vmatprep.subr.mxu0 0.0
          %953 = vmatpush1.msra.mxu0 0.0
          %954 = vmatprep.subr.mxu0 0.0
          %955 = vmatpush1.msra.mxu0 0.0
          %956 = vmatprep.subr.mxu0 0.0
          %957 = vmatpush1.msra.mxu0 0.0
          %958 = vmatprep.subr.mxu0 0.0
          %959 = vmatpush1.msra.mxu0 0.0
          %960 = vmatprep.subr.mxu0 0.0
          %961 = vmatpush1.msra.mxu0 0.0
          %962 = vmatprep.subr.mxu0 0.0
          %963 = vmatpush1.msra.mxu0 0.0
          %964 = vmatprep.subr.mxu0 0.0
          %965 = vmatpush1.msra.mxu0 0.0
          %966 = vmatprep.subr.mxu0 0.0
          %967 = vmatpush1.msra.mxu0 0.0
          %968 = vmatprep.subr.mxu0 0.0
          %969 = vmatpush1.msra.mxu0 0.0
          %970 = vmatprep.mubr.f32.mxu0 0.0
          %971 = vmatmul.mubr.f32.gmra.mrb[0].mxu0 %v904
          %v972 = vpop.f32.mrb[0].mxu0
          %v973 = vadd.f32 0.0, %v972
          %v974 = vpop.f32.mrb[0].mxu0
          %975 = vdwg.mxu0
          %v976 = vadd.f32 %v901, %v973
          %v977 = vmul.f32 %v976, 0.015625
          %v978 = vld [vmem:[%s3] sm:$0xff]
          %v979 = vld [vmem:[%s3 + $0x8] sm:$0xff]
          %v980 = vld [vmem:[%s3 + $0x10] sm:$0xff]
          %v981 = vld [vmem:[%s3 + $0x18] sm:$0xff]
          %v982 = vld [vmem:[%s3 + $0x20] sm:$0xff]
          %v983 = vld [vmem:[%s3 + $0x28] sm:$0xff]
          %v984 = vld [vmem:[%s3 + $0x30] sm:$0xff]
          %v985 = vld [vmem:[%s4] sm:$0x1]
          %vm986 = vcmask 457728
          %v988 = vsel %vm986, %v977, 0
          %990 = vmatprep.subr.mxu0 0.0
          %991 = vmatpush1.msra.mxu0 %v978
          %992 = vmatprep.subr.mxu0 0.0
          %993 = vmatpush1.msra.mxu0 %v979
          %994 = vmatprep.subr.mxu0 0.0
          %995 = vmatpush1.msra.mxu0 %v980
          %996 = vmatprep.subr.mxu0 0.0
          %997 = vmatpush1.msra.mxu0 %v981
          %998 = vmatprep.subr.mxu0 0.0
          %999 = vmatpush1.msra.mxu0 %v982
          %1000 = vmatprep.subr.mxu0 0.0
          %1001 = vmatpush1.msra.mxu0 %v983
          %1002 = vmatprep.subr.mxu0 0.0
          %1003 = vmatpush1.msra.mxu0 %v984
          %1004 = vmatprep.subr.mxu0 0.0
          %1005 = vmatpush1.msra.mxu0 0.0
          %1006 = vmatprep.subr.mxu0 0.0
          %1007 = vmatpush1.msra.mxu0 0.0
          %1008 = vmatprep.subr.mxu0 0.0
          %1009 = vmatpush1.msra.mxu0 0.0
          %1010 = vmatprep.subr.mxu0 0.0
          %1011 = vmatpush1.msra.mxu0 0.0
          %1012 = vmatprep.subr.mxu0 0.0
          %1013 = vmatpush1.msra.mxu0 0.0
          %1014 = vmatprep.subr.mxu0 0.0
          %1015 = vmatpush1.msra.mxu0 0.0
          %1016 = vmatprep.subr.mxu0 0.0
          %1017 = vmatpush1.msra.mxu0 0.0
          %1018 = vmatprep.subr.mxu0 0.0
          %1019 = vmatpush1.msra.mxu0 0.0
          %1020 = vmatprep.subr.mxu0 0.0
          %1021 = vmatpush1.msra.mxu0 0.0
          %1022 = vmatprep.subr.mxu0 0.0
          %1023 = vmatpush1.msra.mxu0 0.0
          %1024 = vmatprep.subr.mxu0 0.0
          %1025 = vmatpush1.msra.mxu0 0.0
          %1026 = vmatprep.subr.mxu0 0.0
          %1027 = vmatpush1.msra.mxu0 0.0
          %1028 = vmatprep.subr.mxu0 0.0
          %1029 = vmatpush1.msra.mxu0 0.0
          %1030 = vmatprep.subr.mxu0 0.0
          %1031 = vmatpush1.msra.mxu0 0.0
          %1032 = vmatprep.subr.mxu0 0.0
          %1033 = vmatpush1.msra.mxu0 0.0
          %1034 = vmatprep.subr.mxu0 0.0
          %1035 = vmatpush1.msra.mxu0 0.0
          %1036 = vmatprep.subr.mxu0 0.0
          %1037 = vmatpush1.msra.mxu0 0.0
          %1038 = vmatprep.subr.mxu0 0.0
          %1039 = vmatpush1.msra.mxu0 0.0
          %1040 = vmatprep.subr.mxu0 0.0
          %1041 = vmatpush1.msra.mxu0 0.0
          %1042 = vmatprep.subr.mxu0 0.0
          %1043 = vmatpush1.msra.mxu0 0.0
          %1044 = vmatprep.subr.mxu0 0.0
          %1045 = vmatpush1.msra.mxu0 0.0
          %1046 = vmatprep.subr.mxu0 0.0
          %1047 = vmatpush1.msra.mxu0 0.0
          %1048 = vmatprep.subr.mxu0 0.0
          %1049 = vmatpush1.msra.mxu0 0.0
          %1050 = vmatprep.subr.mxu0 0.0
          %1051 = vmatpush1.msra.mxu0 0.0
          %1052 = vmatprep.subr.mxu0 0.0
          %1053 = vmatpush1.msra.mxu0 0.0
          %1054 = vmatprep.mubr.f32.mxu0 0.0
          %1055 = vmatmul.mubr.f32.gmra.mrb[0].mxu0 %v988
          %v1056 = vpop.f32.mrb[0].mxu0
          %v1057 = vadd.f32 %v985, %v1056
          %v1058 = vpop.f32.mrb[0].mxu0
          %1059 = vdwg.mxu0
          %vm1060 = vcmask 40960
          %1061 = vst.msk [vmem:[%s241] sm:$0x1] %vm1060, %v1057
        $region48: #{hms_forward.1} parent=39 // pred_fallthru
          _
        %s1062 = sand.u32 %s151, 1
        %s1063 = scalar_lea.sflag [#allocation4], %s1062
        %s1064 = sand.u32 %s151, 1
        %s1065 = scalar_lea.vmem [#allocation3], %s1064
        // Predicated region
        $region49: #{hms_forward.1} parent=39 // pred_check
          %p1066 = pneg %p161
        $region50: #{hms_forward.1} parent=39 // pred_check_branch
          %1068 = sbr.rel (%p1066) target = $region52
        $region51: #{hms_forward.1} parent=39 // pred_region
          %s1070 = ssub.s32 16, 16
          %1071 = vsyncadd %s1063, %s1070
          %s1072 = smul.addr %s23, 16
          %s1073 = scalar_lea.hbm %s5, %s1072
          %s1075 = sshll.u32 %s1065, 4
          %s1076 = int_to_ptr.vmem [resolvable:$true] %s1075
          %1078 = dma.vmem_to_hbm [thread:$0]  %s1076, 16, %s1073, %s1063
        $region52: #{hms_forward.1} parent=39 // pred_fallthru
          _
      $region40: #{hms_forward.1} parent=5 // pred_fallthru
        _
      %p1079 = scmp.le.s32.totalorder 2, %s14
      // Predicated region
      $region53: #{hms_forward.1} parent=5 // pred_check
        %p1080 = pneg %p1079
      $region54: #{hms_forward.1} parent=5 // pred_check_branch
        %1082 = sbr.rel (%p1080) target = $region56
      $region55: #{hms_forward.1} parent=5 // pred_region
        %s1083 = ssub.s32 %s14, 2
        // Predicated region
        $region57: #{hms_forward.1} parent=55 // pred_check
          %p1084 = pneg %p167
        $region58: #{hms_forward.1} parent=55 // pred_check_branch
          %1086 = sbr.rel (%p1084) target = $region60
        $region59: #{hms_forward.1} parent=55 // pred_region
          %s1087 = sand.u32 %s152, 1
          %s1088 = scalar_lea.sflag [#allocation4], %s1087
          %s1089 = sand.u32 %s152, 1
          %s1090 = scalar_lea.vmem [#allocation3], %s1089
          %1091 = dma.done %s1088, 16
        $region60: #{hms_forward.1} parent=55 // pred_fallthru
          _
      $region56: #{hms_forward.1} parent=5 // pred_fallthru
        _
    $region6: #{hms_forward.1} parent=1 // loop_footer
      %s18 = sadd.s32 1, %s14
    $region7: #{hms_forward.1} parent=1 // loop_footer_branch
      %13 = sbr.rel target = $region3
    $region8: #{hms_forward.1} parent=1 // loop_exit
      _
    %1092 = vsyncpa [#allocation4], 1
    %s1093 = scalar_lea.sflag [#allocation4], 1
    %1094 = vsyncpa %s1093, 1

</llo_original>
